<compile_context>
chip_gen: v5e
topology: v5e:2x2
jax: 0.10.0
libtpu: 0.0.40
codegen_flags: <defaults>
</compile_context>

<pallas_src>
import functools

import jax
import jax.numpy as jnp
from jax.experimental import pallas as pl
from jax.experimental.pallas import tpu as pltpu

LANE = 128  # vreg lane width


def _round_up(x, m):
    return (x + m - 1) // m * m


def simple_nn_kernel(x_ref, w1_ref, b1_ref, w2_ref, b2_ref, out_ref):
    # x:  (tb, D_in)   f32 (cast to bf16 in-kernel for the MXU)
    # w1: (D_in, H_p)  bf16     b1: (1, H_p) f32
    # w2: (H_p, C_p)   bf16     b2: (1, C_p) f32
    # out: (tb, C_p)   f32
    x = x_ref[...].astype(jnp.bfloat16)
    # fc1: bf16 MXU matmul, f32 accumulation; bias + ReLU in f32 (VPU).
    h = jnp.dot(x, w1_ref[...], preferred_element_type=jnp.float32)
    h = jnp.maximum(h + b1_ref[...], 0.0)
    # fc2: cast activations back to bf16 for the MXU, accumulate in f32.
    y = jnp.dot(h.astype(w2_ref.dtype), w2_ref[...],
                preferred_element_type=jnp.float32)
    out_ref[...] = (y + b2_ref[...]).astype(out_ref.dtype)


def prepare_params(w1, b1, w2, b2):
    """One-time padding of H and C to 128-lane multiples + bf16 cast of the
    matmul weights. K (input features) stays unpadded — full-dim blocks are
    exempt from the (8,128) rule. Padded regions are exactly zero, so
    dot / ReLU / bias are unaffected.

    w1: (D_in, H), b1: (H,) or (1, H), w2: (H, C), b2: (C,) or (1, C).
    """
    d_in, hidden = w1.shape
    _, n_cls = w2.shape
    h_p = _round_up(hidden, LANE)
    c_p = _round_up(n_cls, LANE)

    w1_p = jnp.zeros((d_in, h_p), jnp.bfloat16)
    w1_p = w1_p.at[:, :hidden].set(w1.astype(jnp.bfloat16))
    b1_p = jnp.zeros((1, h_p), jnp.float32)
    b1_p = b1_p.at[:, :hidden].set(jnp.reshape(b1, (1, -1)))

    w2_p = jnp.zeros((h_p, c_p), jnp.bfloat16)
    w2_p = w2_p.at[:hidden, :n_cls].set(w2.astype(jnp.bfloat16))
    b2_p = jnp.zeros((1, c_p), jnp.float32)
    b2_p = b2_p.at[:, :n_cls].set(jnp.reshape(b2, (1, -1)))

    return w1_p, b1_p, w2_p, b2_p


@functools.partial(jax.jit,
                   static_argnames=("num_classes", "tile_b", "slice_output"))
def simple_nn_forward(x, w1_p, b1_p, w2_p, b2_p, *, num_classes,
                      tile_b=512, slice_output=True):
    """Fused MLP forward, streamed over the batch dimension.

    Grid = (ceil(B / tile_b),); weights are held VMEM-resident across grid
    steps via constant index_maps; x / out tiles are double-buffered by the
    Pallas pipeline. The batch axis is marked "parallel" so v7x shards it
    across both TensorCores.
    """
    batch, d_in = x.shape
    assert w1_p.shape[0] == d_in
    h_p = w1_p.shape[1]
    c_p = w2_p.shape[1]

    # Clamp the tile for tiny batches; pad rows only if batch isn't a multiple
    # (zero rows are numerically inert and sliced back off below).
    tb = min(tile_b, _round_up(batch, 8))
    batch_p = _round_up(batch, tb)
    x_in = x if batch_p == batch else jnp.pad(x, ((0, batch_p - batch), (0, 0)))

    out_p = pl.pallas_call(
        simple_nn_kernel,
        out_shape=jax.ShapeDtypeStruct((batch_p, c_p), jnp.float32),
        grid=(batch_p // tb,),
        in_specs=[
            pl.BlockSpec((tb, d_in), lambda i: (i, 0)),    # x: streamed
            pl.BlockSpec((d_in, h_p), lambda i: (0, 0)),   # w1: resident
            pl.BlockSpec((1, h_p), lambda i: (0, 0)),      # b1: resident
            pl.BlockSpec((h_p, c_p), lambda i: (0, 0)),    # w2: resident
            pl.BlockSpec((1, c_p), lambda i: (0, 0)),      # b2: resident
        ],
        out_specs=pl.BlockSpec((tb, c_p), lambda i: (i, 0)),
        compiler_params=pltpu.CompilerParams(
            dimension_semantics=("parallel",),
            vmem_limit_bytes=32 * 1024 * 1024,
        ),
    )(x_in, w1_p, b1_p, w2_p, b2_p)

    if batch_p != batch:
        out_p = out_p[:batch]
    if slice_output:
        return out_p[:, :num_classes]
    return out_p  # lane-dense (B, C_p) block; consumer slices lazily


def init_params(key, input_size, hidden_size, num_classes):
    """Deterministic init mimicking nn.Linear's U(-1/sqrt(fan_in), 1/sqrt(fan_in)).
    Weights are stored as (in, out) — transposed relative to PyTorch's (out, in)."""
    k1, k2, k3, k4 = jax.random.split(key, 4)
    bound1 = 1.0 / jnp.sqrt(jnp.float32(input_size))
    bound2 = 1.0 / jnp.sqrt(jnp.float32(hidden_size))
    w1 = jax.random.uniform(k1, (input_size, hidden_size), jnp.float32,
                            minval=-bound1, maxval=bound1)
    b1 = jax.random.uniform(k2, (1, hidden_size), jnp.float32,
                            minval=-bound1, maxval=bound1)
    w2 = jax.random.uniform(k3, (hidden_size, num_classes), jnp.float32,
                            minval=-bound2, maxval=bound2)
    b2 = jax.random.uniform(k4, (1, num_classes), jnp.float32,
                            minval=-bound2, maxval=bound2)
    return w1, b1, w2, b2


def _reference(x, w1, b1, w2, b2):
    """Two references: bf16-input/f32-accumulate (matches kernel dtype path)
    and full-f32 PyTorch semantics (loose check)."""
    x_bf = x.astype(jnp.bfloat16)
    h = jnp.maximum(
        jnp.dot(x_bf, w1.astype(jnp.bfloat16),
                preferred_element_type=jnp.float32) + b1, 0.0)
    ref_bf16 = jnp.dot(h.astype(jnp.bfloat16), w2.astype(jnp.bfloat16),
                       preferred_element_type=jnp.float32) + b2
    ref_f32 = jnp.maximum(x @ w1 + b1, 0.0) @ w2 + b2
    return ref_bf16, ref_f32


if __name__ == "__main__":
    # Small shapes consistent with the module:
    #   feature_dim = one_hot_dim + 2 + 3 -> pick 8, max_length -> pick 5
    #   input_size  = max_length * feature_dim = 40 (X.reshape(N, -1))
    max_length = 5
    feature_dim = 8
    input_size = max_length * feature_dim   # 40
    hidden_size = 250
    num_classes = 2

    key = jax.random.PRNGKey(0)
    kx, kp, kx2 = jax.random.split(key, 3)
    w1, b1, w2, b2 = init_params(kp, input_size, hidden_size, num_classes)

    # One-time padding / bf16 cast of the parameters.
    w1_p, b1_p, w2_p, b2_p = prepare_params(w1, b1, w2, b2)

    # --- Case 1: tiny batch (latency path, single grid step) ---------------
    batch = 8
    x = jax.random.normal(kx, (batch, input_size), jnp.float32)
    out = simple_nn_forward(x, w1_p, b1_p, w2_p, b2_p,
                            num_classes=num_classes)
    out = jax.block_until_ready(out)
    ref_bf16, ref_f32 = _reference(x, w1, b1, w2, b2)
    assert out.shape == (batch, num_classes)
    assert jnp.allclose(out, ref_bf16, atol=1e-3, rtol=1e-3), \
        float(jnp.max(jnp.abs(out - ref_bf16)))
    assert jnp.allclose(out, ref_f32, atol=5e-2, rtol=5e-2), \
        float(jnp.max(jnp.abs(out - ref_f32)))

    # --- Case 2: batched throughput path (multi-step grid over rows) -------
    batch2 = 1024
    x2 = jax.random.normal(kx2, (batch2, input_size), jnp.float32)
    out2 = simple_nn_forward(x2, w1_p, b1_p, w2_p, b2_p,
                             num_classes=num_classes, tile_b=256)
    out2 = jax.block_until_ready(out2)
    ref2_bf16, ref2_f32 = _reference(x2, w1, b1, w2, b2)
    assert out2.shape == (batch2, num_classes)
    assert jnp.allclose(out2, ref2_bf16, atol=1e-3, rtol=1e-3), \
        float(jnp.max(jnp.abs(out2 - ref2_bf16)))
    assert jnp.allclose(out2, ref2_f32, atol=5e-2, rtol=5e-2), \
        float(jnp.max(jnp.abs(out2 - ref2_f32)))

    print("KERNEL_OK")
</pallas_src>

<mosaic_0001>
module attributes {stable_mosaic.version = 11 : i64} {
  func.func @simple_nn_kernel(%arg0: i32, %arg1: memref<8x40xf32, #tpu.memory_space<vmem>>, %arg2: memref<40x256xbf16, #tpu.memory_space<vmem>>, %arg3: memref<1x256xf32, #tpu.memory_space<vmem>>, %arg4: memref<256x128xbf16, #tpu.memory_space<vmem>>, %arg5: memref<1x128xf32, #tpu.memory_space<vmem>>, %arg6: memref<8x128xf32, #tpu.memory_space<vmem>>) attributes {dimension_semantics = [#tpu.dimension_semantics<parallel>], iteration_bounds = array<i64: 1>, scalar_prefetch = 0 : i64, scratch_operands = 0 : i64, tpu.core_type = #tpu.core_type<tc>, window_params = [{transform_indices = @transform_0, window_bounds = array<i64: 8, 40>}, {pipeline_mode = #tpu.pipeline_mode<synchronous>, transform_indices = @transform_1, window_bounds = array<i64: 40, 256>}, {pipeline_mode = #tpu.pipeline_mode<synchronous>, transform_indices = @transform_2, window_bounds = array<i64: 1, 256>}, {pipeline_mode = #tpu.pipeline_mode<synchronous>, transform_indices = @transform_3, window_bounds = array<i64: 256, 128>}, {pipeline_mode = #tpu.pipeline_mode<synchronous>, transform_indices = @transform_4, window_bounds = array<i64: 1, 128>}, {transform_indices = @transform_5, window_bounds = array<i64: 8, 128>}]} {
    %c0 = arith.constant 0 : index
    %c0_0 = arith.constant 0 : index
    %0 = vector.load %arg1[%c0, %c0_0] : memref<8x40xf32, #tpu.memory_space<vmem>>, vector<8x40xf32>
    %1 = arith.truncf %0 : vector<8x40xf32> to vector<8x40xbf16>
    %c0_1 = arith.constant 0 : index
    %c0_2 = arith.constant 0 : index
    %2 = vector.load %arg2[%c0_1, %c0_2] : memref<40x256xbf16, #tpu.memory_space<vmem>>, vector<40x256xbf16>
    %cst = arith.constant dense<0.000000e+00> : vector<8x256xf32>
    %3 = tpu.matmul %1, %2, %cst {dimension_numbers = #tpu.dot_dimension_numbers<[1], [0], [0], [1], [0, 0, 1, 1], [], []>} : vector<8x40xbf16>, vector<40x256xbf16>, vector<8x256xf32> -> vector<8x256xf32>
    %c0_3 = arith.constant 0 : index
    %c0_4 = arith.constant 0 : index
    %4 = vector.load %arg3[%c0_3, %c0_4] : memref<1x256xf32, #tpu.memory_space<vmem>>, vector<1x256xf32>
    %5 = vector.broadcast %4 : vector<1x256xf32> to vector<8x256xf32>
    %6 = arith.addf %3, %5 : vector<8x256xf32>
    %cst_5 = arith.constant 0.000000e+00 : f32
    %7 = vector.broadcast %cst_5 : f32 to vector<8x256xf32>
    %8 = arith.maximumf %6, %7 : vector<8x256xf32>
    %9 = arith.truncf %8 : vector<8x256xf32> to vector<8x256xbf16>
    %c0_6 = arith.constant 0 : index
    %c0_7 = arith.constant 0 : index
    %10 = vector.load %arg4[%c0_6, %c0_7] : memref<256x128xbf16, #tpu.memory_space<vmem>>, vector<256x128xbf16>
    %cst_8 = arith.constant dense<0.000000e+00> : vector<8x128xf32>
    %11 = tpu.matmul %9, %10, %cst_8 {dimension_numbers = #tpu.dot_dimension_numbers<[1], [0], [0], [1], [0, 0, 1, 1], [], []>} : vector<8x256xbf16>, vector<256x128xbf16>, vector<8x128xf32> -> vector<8x128xf32>
    %c0_9 = arith.constant 0 : index
    %c0_10 = arith.constant 0 : index
    %12 = vector.load %arg5[%c0_9, %c0_10] : memref<1x128xf32, #tpu.memory_space<vmem>>, vector<1x128xf32>
    %13 = vector.broadcast %12 : vector<1x128xf32> to vector<8x128xf32>
    %14 = arith.addf %11, %13 : vector<8x128xf32>
    %c0_11 = arith.constant 0 : index
    %c0_12 = arith.constant 0 : index
    %15 = vector.load %arg6[%c0_11, %c0_12] : memref<8x128xf32, #tpu.memory_space<vmem>>, vector<8x128xf32>
    tpu.vector_store %arg6[%c0_11, %c0_12], %14 {strides = array<i32>} : memref<8x128xf32, #tpu.memory_space<vmem>>, vector<8x128xf32>,
    return
  }
  func.func @transform_0(%arg0: i32) -> (i32, i32) {
    %c0_i32 = arith.constant 0 : i32
    %c0_i32_0 = arith.constant 0 : i32
    return %arg0, %c0_i32 : i32, i32
  }
  func.func @transform_1(%arg0: i32) -> (i32, i32) {
    %c0_i32 = arith.constant 0 : i32
    %c0_i32_0 = arith.constant 0 : i32
    %c0_i32_1 = arith.constant 0 : i32
    return %c0_i32, %c0_i32_0 : i32, i32
  }
  func.func @transform_2(%arg0: i32) -> (i32, i32) {
    %c0_i32 = arith.constant 0 : i32
    %c0_i32_0 = arith.constant 0 : i32
    %c0_i32_1 = arith.constant 0 : i32
    return %c0_i32, %c0_i32_0 : i32, i32
  }
  func.func @transform_3(%arg0: i32) -> (i32, i32) {
    %c0_i32 = arith.constant 0 : i32
    %c0_i32_0 = arith.constant 0 : i32
    %c0_i32_1 = arith.constant 0 : i32
    return %c0_i32, %c0_i32_0 : i32, i32
  }
  func.func @transform_4(%arg0: i32) -> (i32, i32) {
    %c0_i32 = arith.constant 0 : i32
    %c0_i32_0 = arith.constant 0 : i32
    %c0_i32_1 = arith.constant 0 : i32
    return %c0_i32, %c0_i32_0 : i32, i32
  }
  func.func @transform_5(%arg0: i32) -> (i32, i32) {
    %c0_i32 = arith.constant 0 : i32
    %c0_i32_0 = arith.constant 0 : i32
    return %arg0, %c0_i32 : i32, i32
  }
}

</mosaic_0001>

<llo_original>
// kernel: simple_nn_forward.1
$region0: #{simple_nn_forward.1}
  #allocation0 [shape = 'u32[]', space=smem, size = 0x4, offset = 0x4, fixed_abs, tag = 'smem constant byte address 0x4 - core index']
  #allocation1 [shape = 'u32[72,128]{1,0:T(1,128)}', space=vmem, size = 0x9000, scoped, tag = 'internal scratch']
  %s0 = inlined_call_operand.hbm [shape: f32[8,40], index: 0, kind: input, shape index: {}]
  %s1 = inlined_call_operand.hbm [shape: bf16[40,256], index: 1, kind: input, shape index: {}]
  %s2 = inlined_call_operand.hbm [shape: f32[1,256], index: 2, kind: input, shape index: {}]
  %s3 = inlined_call_operand.hbm [shape: bf16[256,128], index: 3, kind: input, shape index: {}]
  %s4 = inlined_call_operand.vmem [shape: f32[1,128], index: 4, kind: input, shape index: {}]
  %s5 = inlined_call_operand.vmem [shape: f32[8,128], index: 5, kind: output, shape index: {}]
  %s6 = sld [smem:[#allocation0]]
  $region46: #{simple_nn_forward.1} parent=0
    _
  %s8 = ssub.s32 1, %s6
  %s9 = scalar_select 0, %s8, %s6
  $region1: #{simple_nn_forward.1} parent=0
    #allocation2 [shape = 'u8[4096]{0}', space=vmem, size = 0x1000, scoped, tag = 'input window, operand 0, single buffered']
    #allocation3 [shape = 's32[1]{0}', space=sflag, size = 0x4, scoped, tag = 'scoped memory for simple_nn_forward.1']
    #allocation4 [shape = 'u8[20480]{0}', space=vmem, size = 0x5000, scoped, tag = 'input window, operand 1, single buffered']
    #allocation5 [shape = 's32[1]{0}', space=sflag, size = 0x4, scoped, tag = 'scoped memory for simple_nn_forward.1']
    #allocation6 [shape = 'u8[1024]{0}', space=vmem, size = 0x400, scoped, tag = 'input window, operand 2, single buffered']
    #allocation7 [shape = 'u8[65536]{0}', space=vmem, size = 0x10000, scoped, tag = 'input window, operand 3, single buffered']
    #allocation8 [shape = 's32[1]{0}', space=sflag, size = 0x4, scoped, tag = 'scoped memory for simple_nn_forward.1']
    %10 = vsyncpa [#allocation3], 0
    %11 = vsyncpa [#allocation5], 0
    %12 = vsyncpa [#allocation8], 0
    // Predicated region
    $region2: #{simple_nn_forward.1} parent=1 // pred_check
      _
    $region3: #{simple_nn_forward.1} parent=1 // pred_check_branch
      %14 = sbr.rel (0) target = $region5
    $region4: #{simple_nn_forward.1} parent=1 // pred_region
      %16 = vsyncadd [#allocation3], 0
      %s18 = sshll.u32 %s0, 4
      %s19 = int_to_ptr.hbm [resolvable:$true] %s18
      %s20 = sshll.u32 [#allocation2], 4
      %s21 = int_to_ptr.vmem [resolvable:$true] %s20
      %23 = dma.hbm_to_vmem [thread:$0]  %s19, 128, %s21, [#allocation3]
    $region5: #{simple_nn_forward.1} parent=1 // pred_fallthru
      _
    // Predicated region
    $region6: #{simple_nn_forward.1} parent=1 // pred_check
      _
    $region7: #{simple_nn_forward.1} parent=1 // pred_check_branch
      %25 = sbr.rel (0) target = $region9
    $region8: #{simple_nn_forward.1} parent=1 // pred_region
      %27 = vsyncadd [#allocation5], 0
      %s28 = sshll.u32 %s1, 4
      %s29 = int_to_ptr.hbm [resolvable:$true] %s28
      %s30 = sshll.u32 [#allocation4], 4
      %s31 = int_to_ptr.vmem [resolvable:$true] %s30
      %36 = dma.hbm_to_vmem [thread:$0]  %s29, 640, %s31, [#allocation5], 128, 128, 8
    $region9: #{simple_nn_forward.1} parent=1 // pred_fallthru
      _
    // Predicated region
    $region10: #{simple_nn_forward.1} parent=1 // pred_check
      _
    $region11: #{simple_nn_forward.1} parent=1 // pred_check_branch
      %38 = sbr.rel (0) target = $region13
    $region12: #{simple_nn_forward.1} parent=1 // pred_region
      %40 = vsyncadd [#allocation5], 0
      %s42 = sshll.u32 %s2, 4
      %s43 = int_to_ptr.hbm [resolvable:$true] %s42
      %s44 = sshll.u32 [#allocation6], 4
      %s45 = int_to_ptr.vmem [resolvable:$true] %s44
      %47 = dma.hbm_to_vmem [thread:$0]  %s43, 32, %s45, [#allocation5]
    $region13: #{simple_nn_forward.1} parent=1 // pred_fallthru
      _
    // Predicated region
    $region14: #{simple_nn_forward.1} parent=1 // pred_check
      _
    $region15: #{simple_nn_forward.1} parent=1 // pred_check_branch
      %49 = sbr.rel (0) target = $region17
    $region16: #{simple_nn_forward.1} parent=1 // pred_region
      %51 = vsyncadd [#allocation8], 0
      %s52 = sshll.u32 %s3, 4
      %s53 = int_to_ptr.hbm [resolvable:$true] %s52
      %s54 = sshll.u32 [#allocation7], 4
      %s55 = int_to_ptr.vmem [resolvable:$true] %s54
      %60 = dma.hbm_to_vmem [thread:$0]  %s53, 2048, %s55, [#allocation8], 64, 64, 4
    $region17: #{simple_nn_forward.1} parent=1 // pred_fallthru
      _
    // Predicated region
    $region18: #{simple_nn_forward.1} parent=1 // pred_check
      _
    $region19: #{simple_nn_forward.1} parent=1 // pred_check_branch
      %62 = sbr.rel (0) target = $region21
    $region20: #{simple_nn_forward.1} parent=1 // pred_region
      _
    $region21: #{simple_nn_forward.1} parent=1 // pred_fallthru
      _
    // Predicated region
    $region22: #{simple_nn_forward.1} parent=1 // pred_check
      _
    $region23: #{simple_nn_forward.1} parent=1 // pred_check_branch
      %64 = sbr.rel (0) target = $region25
    $region24: #{simple_nn_forward.1} parent=1 // pred_region
      %66 = dma.done [#allocation3], 128
    $region25: #{simple_nn_forward.1} parent=1 // pred_fallthru
      _
    // Predicated region
    $region26: #{simple_nn_forward.1} parent=1 // pred_check
      _
    $region27: #{simple_nn_forward.1} parent=1 // pred_check_branch
      %68 = sbr.rel (0) target = $region29
    $region28: #{simple_nn_forward.1} parent=1 // pred_region
      %70 = dma.done [#allocation5], 640
    $region29: #{simple_nn_forward.1} parent=1 // pred_fallthru
      _
    // Predicated region
    $region30: #{simple_nn_forward.1} parent=1 // pred_check
      _
    $region31: #{simple_nn_forward.1} parent=1 // pred_check_branch
      %72 = sbr.rel (0) target = $region33
    $region32: #{simple_nn_forward.1} parent=1 // pred_region
      %74 = dma.done [#allocation5], 32
    $region33: #{simple_nn_forward.1} parent=1 // pred_fallthru
      _
    // Predicated region
    $region34: #{simple_nn_forward.1} parent=1 // pred_check
      _
    $region35: #{simple_nn_forward.1} parent=1 // pred_check_branch
      %76 = sbr.rel (0) target = $region37
    $region36: #{simple_nn_forward.1} parent=1 // pred_region
      %78 = dma.done [#allocation8], 2048
    $region37: #{simple_nn_forward.1} parent=1 // pred_fallthru
      _
    %v80 = vld [vmem:[#allocation2] sm:$0xff]
    %v81 = vpack.c.bf16 %v80, %v80
    %v82 = vld [vmem:[#allocation4] sm:$0xff]
    %v83 = vld [vmem:[#allocation4 + $0x8] sm:$0xff]
    %v84 = vld [vmem:[#allocation4 + $0x10] sm:$0xff]
    %v85 = vld [vmem:[#allocation4 + $0x18] sm:$0xff]
    %v86 = vld [vmem:[#allocation4 + $0x20] sm:$0xff]
    %v87 = vld [vmem:[#allocation6] sm:$0x3]
    %v89 = vperm.slane %v87, 0
    %v90 = vperm.slane %v87, 1
    %v98 = vunpack.c.l.b16 %v82
    %v99 = vunpack.c.h.b16 %v82
    %v100 = vunpack.c.l.b16 %v83
    %v101 = vunpack.c.h.b16 %v83
    %v102 = vunpack.c.l.b16 %v84
    %v103 = vunpack.c.h.b16 %v84
    %v104 = vunpack.c.l.b16 %v85
    %v105 = vunpack.c.h.b16 %v85
    %v106 = vunpack.c.l.b16 %v86
    %v107 = vunpack.c.h.b16 %v86
    %v108 = vpack.c.b16 %v100, %v98
    %v109 = vpack.c.b16 %v101, %v99
    %v110 = vpack.c.b16 %v104, %v102
    %v111 = vpack.c.b16 %v105, %v103
    %v112 = vpack.c.b16 %v106, %v106
    %v113 = vpack.c.b16 %v107, %v107
    %vm118 = vcmask 326656
    %v120 = vsel %vm118, %v81, 0
    %vm122 = vcmask 1043456
    %v124 = vsel %vm122, %v112, 0
    %v127 = vsel %vm122, %v113, 0
    %129 = vmatpush.bf16.msra.mxu0 0
    %130 = vmatpush.bf16.msra.mxu0 0
    %131 = vmatpush.bf16.msra.mxu0 0
    %132 = vmatpush.bf16.msra.mxu0 0
    %133 = vmatpush.bf16.msra.mxu0 0
    %134 = vmatpush.bf16.msra.mxu0 %v124
    %135 = vmatpush.bf16.msra.mxu0 %v110
    %136 = vmatpush.bf16.msra.mxu0 %v108
    %137 = vmatmul.bf16.gmra.mxu0 %v120
    %v138 = vpop.f32.mrf.mxu0
    %v139 = vadd.f32 %v89, %v138
    %v140 = vpop.f32.mrf.mxu0
    %141 = vdwg.mxu0
    %142 = vmatpush.bf16.msra.mxu0 0
    %143 = vmatpush.bf16.msra.mxu0 0
    %144 = vmatpush.bf16.msra.mxu0 0
    %145 = vmatpush.bf16.msra.mxu0 0
    %146 = vmatpush.bf16.msra.mxu0 0
    %147 = vmatpush.bf16.msra.mxu0 %v127
    %148 = vmatpush.bf16.msra.mxu0 %v111
    %149 = vmatpush.bf16.msra.mxu0 %v109
    %150 = vmatmul.bf16.gmra.mxu0 %v120
    %v151 = vpop.f32.mrf.mxu0
    %v152 = vadd.f32 %v90, %v151
    %v153 = vpop.f32.mrf.mxu0
    %154 = vdwg.mxu0
    %v155 = vmax.f32 %v139, 0.0
    %v156 = vmax.f32 %v152, 0.0
    %v157 = vpack.c.bf16 %v155, %v155
    %v158 = vpack.c.bf16 %v156, %v156
    %v159 = vld [vmem:[#allocation7] sm:$0xf]
    %v160 = vld [vmem:[#allocation7 + $0x4] sm:$0xf]
    %v161 = vld [vmem:[#allocation7 + $0x8] sm:$0xf]
    %v162 = vld [vmem:[#allocation7 + $0xc] sm:$0xf]
    %v163 = vld [vmem:[#allocation7 + $0x10] sm:$0xf]
    %v164 = vld [vmem:[#allocation7 + $0x14] sm:$0xf]
    %v165 = vld [vmem:[#allocation7 + $0x18] sm:$0xf]
    %v166 = vld [vmem:[#allocation7 + $0x1c] sm:$0xf]
    %v167 = vld [vmem:[#allocation7 + $0x20] sm:$0xf]
    %v168 = vld [vmem:[#allocation7 + $0x24] sm:$0xf]
    %v169 = vld [vmem:[#allocation7 + $0x28] sm:$0xf]
    %v170 = vld [vmem:[#allocation7 + $0x2c] sm:$0xf]
    %v171 = vld [vmem:[#allocation7 + $0x30] sm:$0xf]
    %v172 = vld [vmem:[#allocation7 + $0x34] sm:$0xf]
    %v173 = vld [vmem:[#allocation7 + $0x38] sm:$0xf]
    %v174 = vld [vmem:[#allocation7 + $0x3c] sm:$0xf]
    %v175 = vld [vmem:[#allocation7 + $0x40] sm:$0xf]
    %v176 = vld [vmem:[#allocation7 + $0x44] sm:$0xf]
    %v177 = vld [vmem:[#allocation7 + $0x48] sm:$0xf]
    %v178 = vld [vmem:[#allocation7 + $0x4c] sm:$0xf]
    %v179 = vld [vmem:[#allocation7 + $0x50] sm:$0xf]
    %v180 = vld [vmem:[#allocation7 + $0x54] sm:$0xf]
    %v181 = vld [vmem:[#allocation7 + $0x58] sm:$0xf]
    %v182 = vld [vmem:[#allocation7 + $0x5c] sm:$0xf]
    %v183 = vld [vmem:[#allocation7 + $0x60] sm:$0xf]
    %v184 = vld [vmem:[#allocation7 + $0x64] sm:$0xf]
    %v185 = vld [vmem:[#allocation7 + $0x68] sm:$0xf]
    %v186 = vld [vmem:[#allocation7 + $0x6c] sm:$0xf]
    %v187 = vld [vmem:[#allocation7 + $0x70] sm:$0xf]
    %v188 = vld [vmem:[#allocation7 + $0x74] sm:$0xf]
    %v189 = vld [vmem:[#allocation7 + $0x78] sm:$0xf]
    %v190 = vld [vmem:[#allocation7 + $0x7c] sm:$0xf]
    %v191 = vld [vmem:[%s4] sm:$0x1]
    %v193 = vperm.slane %v191, 0
    %v227 = vunpack.c.l.b16 %v159
    %v228 = vunpack.c.l.b16 %v160
    %v229 = vunpack.c.l.b16 %v161
    %v230 = vunpack.c.l.b16 %v162
    %v231 = vunpack.c.l.b16 %v163
    %v232 = vunpack.c.l.b16 %v164
    %v233 = vunpack.c.l.b16 %v165
    %v234 = vunpack.c.l.b16 %v166
    %v235 = vunpack.c.l.b16 %v167
    %v236 = vunpack.c.l.b16 %v168
    %v237 = vunpack.c.l.b16 %v169
    %v238 = vunpack.c.l.b16 %v170
    %v239 = vunpack.c.l.b16 %v171
    %v240 = vunpack.c.l.b16 %v172
    %v241 = vunpack.c.l.b16 %v173
    %v242 = vunpack.c.l.b16 %v174
    %v243 = vunpack.c.l.b16 %v175
    %v244 = vunpack.c.l.b16 %v176
    %v245 = vunpack.c.l.b16 %v177
    %v246 = vunpack.c.l.b16 %v178
    %v247 = vunpack.c.l.b16 %v179
    %v248 = vunpack.c.l.b16 %v180
    %v249 = vunpack.c.l.b16 %v181
    %v250 = vunpack.c.l.b16 %v182
    %v251 = vunpack.c.l.b16 %v183
    %v252 = vunpack.c.l.b16 %v184
    %v253 = vunpack.c.l.b16 %v185
    %v254 = vunpack.c.l.b16 %v186
    %v255 = vunpack.c.l.b16 %v187
    %v256 = vunpack.c.l.b16 %v188
    %v257 = vunpack.c.l.b16 %v189
    %v258 = vunpack.c.l.b16 %v190
    %v259 = vpack.c.b16 %v228, %v227
    %v260 = vpack.c.b16 %v230, %v229
    %v261 = vpack.c.b16 %v232, %v231
    %v262 = vpack.c.b16 %v234, %v233
    %v263 = vpack.c.b16 %v236, %v235
    %v264 = vpack.c.b16 %v238, %v237
    %v265 = vpack.c.b16 %v240, %v239
    %v266 = vpack.c.b16 %v242, %v241
    %v267 = vpack.c.b16 %v244, %v243
    %v268 = vpack.c.b16 %v246, %v245
    %v269 = vpack.c.b16 %v248, %v247
    %v270 = vpack.c.b16 %v250, %v249
    %v271 = vpack.c.b16 %v252, %v251
    %v272 = vpack.c.b16 %v254, %v253
    %v273 = vpack.c.b16 %v256, %v255
    %v274 = vpack.c.b16 %v258, %v257
    %291 = vmatpush.bf16.msra.mxu0 %v266
    %292 = vmatpush.bf16.msra.mxu0 %v265
    %293 = vmatpush.bf16.msra.mxu0 %v264
    %294 = vmatpush.bf16.msra.mxu0 %v263
    %295 = vmatpush.bf16.msra.mxu0 %v262
    %296 = vmatpush.bf16.msra.mxu0 %v261
    %297 = vmatpush.bf16.msra.mxu0 %v260
    %298 = vmatpush.bf16.msra.mxu0 %v259
    %299 = vmatmul.bf16.gmra.mxu0 %v157
    %v300 = vpop.f32.mrf.mxu0
    %v301 = vadd.f32 %v193, %v300
    %v302 = vpop.f32.mrf.mxu0
    %303 = vdwg.mxu0
    %304 = vmatpush.bf16.msra.mxu0 %v274
    %305 = vmatpush.bf16.msra.mxu0 %v273
    %306 = vmatpush.bf16.msra.mxu0 %v272
    %307 = vmatpush.bf16.msra.mxu0 %v271
    %308 = vmatpush.bf16.msra.mxu0 %v270
    %309 = vmatpush.bf16.msra.mxu0 %v269
    %310 = vmatpush.bf16.msra.mxu0 %v268
    %311 = vmatpush.bf16.msra.mxu0 %v267
    %312 = vmatmul.bf16.gmra.mxu0 %v158
    %v313 = vpop.f32.mrf.mxu0
    %v314 = vadd.f32 %v301, %v313
    %v315 = vpop.f32.mrf.mxu0
    %316 = vdwg.mxu0
    %317 = vst [vmem:[%s5] sm:$0xff] %v314
    // Predicated region
    $region38: #{simple_nn_forward.1} parent=1 // pred_check
      _
    $region39: #{simple_nn_forward.1} parent=1 // pred_check_branch
      %319 = sbr.rel (0) target = $region41
    $region40: #{simple_nn_forward.1} parent=1 // pred_region
      _
    $region41: #{simple_nn_forward.1} parent=1 // pred_fallthru
      _
    // Predicated region
    $region42: #{simple_nn_forward.1} parent=1 // pred_check
      _
    $region43: #{simple_nn_forward.1} parent=1 // pred_check_branch
      %321 = sbr.rel (0) target = $region45
    $region44: #{simple_nn_forward.1} parent=1 // pred_region
      _
    $region45: #{simple_nn_forward.1} parent=1 // pred_fallthru
      _
    %322 = vsyncpa [#allocation3], 1
    %323 = vsyncpa [#allocation5], 1
    %324 = vsyncpa [#allocation8], 1

</llo_original>
